<compile_context>
chip_gen: v7x
topology: tpu7x:2x2x1
jax: 0.10.0
libtpu: 0.0.40
codegen_flags: <defaults>
</compile_context>

<pallas_src>
import functools

import jax
import jax.numpy as jnp
from jax.experimental import pallas as pl
from jax.experimental.pallas import tpu as pltpu

_VMEM_LIMIT_BYTES = 32 * 1024 * 1024  # safe scoped-VMEM budget on v5e / v6e / v7x


# ----------------------------------------------------------------------------- kernels
def _conv_row_kernel(x_ref, w_ref, y_ref, sum_ref, sq_ref, *, kw, stride, ow):
    """Implicit-GEMM conv for one (batch image, output row).

    grid = (N, OH, KH); KH is the reduction axis (last, "arbitrary").  The f32
    output-row block stays VMEM-resident across KH and is accumulated in place.
    BN partial statistics are emitted from the resident block in the last-KH
    epilogue (saves one full HBM pass over the conv output).
    """
    kh = pl.program_id(2)

    @pl.when(kh == 0)
    def _():
        y_ref[...] = jnp.zeros_like(y_ref)

    acc = jnp.zeros(y_ref.shape[2:], jnp.float32)              # (OW, Cout)
    for kj in range(kw):                                       # static unroll, kw <= 7
        r, q = kj % stride, kj // stride
        xs = x_ref[0, 0, r, pl.ds(q, ow), :]                   # (OW, Cin)   bf16
        acc += jnp.dot(xs, w_ref[kh, kj],                      # (Cin, Cout) bf16
                       preferred_element_type=jnp.float32)
    y_ref[...] += acc[None, None]

    @pl.when(kh == pl.num_programs(2) - 1)
    def _():
        y = y_ref[0, 0]                                        # (OW, Cout) final f32
        sum_ref[0, 0] = jnp.sum(y, axis=0, keepdims=True)
        sq_ref[0, 0] = jnp.sum(y * y, axis=0, keepdims=True)


def _maxpool_row_kernel(x_ref, o_ref, *, ow):
    """MaxPool2d(3, 2, 1): one output row per step, running max resident over KH."""
    kh = pl.program_id(2)

    @pl.when(kh == 0)
    def _():
        o_ref[...] = jnp.full(o_ref.shape, -jnp.inf, o_ref.dtype)

    # kernel columns 0,1,2 at stride 2 -> (phase, offset) = (0,0), (1,0), (0,1)
    m = x_ref[0, 0, 0, pl.ds(0, ow), :]
    m = jnp.maximum(m, x_ref[0, 0, 1, pl.ds(0, ow), :])
    m = jnp.maximum(m, x_ref[0, 0, 0, pl.ds(1, ow), :])
    o_ref[...] = jnp.maximum(o_ref[...], m[None, None])


def _bn_act_kernel(y_ref, scale_ref, bias_ref, o_ref, *, relu):
    v = y_ref[...] * scale_ref[...] + bias_ref[...]
    if relu:
        v = jnp.maximum(v, 0.0)
    o_ref[...] = v.astype(o_ref.dtype)


def _bn_add_act_kernel(y_ref, scale_ref, bias_ref, res_ref, o_ref, *, relu):
    v = y_ref[...] * scale_ref[...] + bias_ref[...] + res_ref[...].astype(jnp.float32)
    if relu:
        v = jnp.maximum(v, 0.0)
    o_ref[...] = v.astype(o_ref.dtype)


# ----------------------------------------------------------------------------- layout glue
def _phase_layout(x, stride, pad, pad_value=0.0):
    """Pad H/W and split the W axis into `stride` column phases so the conv/pool
    kernels only ever take unit-stride sublane slices.  Pure layout glue (~1x the
    input); returns array of shape (N, Hp, stride, W_phase, C) and W_phase."""
    N, H, W, C = x.shape
    if pad:
        x = jnp.pad(x, ((0, 0), (pad, pad), (pad, pad), (0, 0)),
                    constant_values=pad_value)
    Hp, Wp = H + 2 * pad, W + 2 * pad
    if stride == 1:
        return x[:, :, None, :, :], Wp
    w_phase = -(-Wp // stride)
    extra = w_phase * stride - Wp
    if extra:
        x = jnp.pad(x, ((0, 0), (0, 0), (0, extra), (0, 0)),
                    constant_values=pad_value)
    x = x.reshape(N, Hp, w_phase, stride, C).transpose(0, 1, 3, 2, 4)
    return x, w_phase


def _pick_row_tile(m, cap=1024):
    """Largest tile dividing m that is a multiple of 8 (or the full extent), <= cap."""
    if m <= cap:
        return m
    for t in range(cap - cap % 8, 0, -8):
        if m % t == 0:
            return t
    return m


# ----------------------------------------------------------------------------- wrappers
def conv2d_bn_stats(x, w, stride, pad):
    """x: (N,H,W,Cin) bf16, w: (KH,KW,Cin,Cout) bf16.
    Returns y (N,OH,OW,Cout) f32 plus per-row BN partial sums (N,OH,1,Cout)."""
    KH, KW, Cin, Cout = w.shape
    N, H, W, _ = x.shape
    if Cin % 8:                                   # conv1 has Cin=3: pad channels
        cpad = 8 - Cin % 8
        x = jnp.pad(x, ((0, 0), (0, 0), (0, 0), (0, cpad)))
        w = jnp.pad(w, ((0, 0), (0, 0), (0, cpad), (0, 0)))
        Cin += cpad
    OH = (H + 2 * pad - KH) // stride + 1
    OW = (W + 2 * pad - KW) // stride + 1
    xph, wphase = _phase_layout(x, stride, pad)
    S = xph.shape[2]

    kern = functools.partial(_conv_row_kernel, kw=KW, stride=stride, ow=OW)
    y, s, sq = pl.pallas_call(
        kern,
        out_shape=(jax.ShapeDtypeStruct((N, OH, OW, Cout), jnp.float32),
                   jax.ShapeDtypeStruct((N, OH, 1, Cout), jnp.float32),
                   jax.ShapeDtypeStruct((N, OH, 1, Cout), jnp.float32)),
        grid_spec=pltpu.PrefetchScalarGridSpec(
            num_scalar_prefetch=0,
            grid=(N, OH, KH),
            in_specs=[
                # one padded input row (all column phases), element row stride*oh+kh
                pl.BlockSpec((1, 1, S, wphase, Cin),
                             lambda n, oh, kh: (n, stride * oh + kh, 0, 0, 0)),
                # full weight tensor, constant index -> DMA'd once, stays VMEM-resident
                pl.BlockSpec((KH, KW, Cin, Cout),
                             lambda n, oh, kh: (0, 0, 0, 0)),
            ],
            out_specs=(
                pl.BlockSpec((1, 1, OW, Cout), lambda n, oh, kh: (n, oh, 0, 0)),
                pl.BlockSpec((1, 1, 1, Cout), lambda n, oh, kh: (n, oh, 0, 0)),
                pl.BlockSpec((1, 1, 1, Cout), lambda n, oh, kh: (n, oh, 0, 0)),
            )),
        compiler_params=pltpu.CompilerParams(
            dimension_semantics=("parallel", "parallel", "arbitrary"),
            vmem_limit_bytes=_VMEM_LIMIT_BYTES),
    )(xph, w)
    return y, s, sq


def bn_apply(y, s, sq, gamma, beta, relu, residual=None, eps=1e-5,
             out_dtype=jnp.bfloat16):
    """Finalize BN batch statistics (tiny JAX reduction over the fused per-row
    partials) and apply scale/bias [+residual] [+ReLU] with a tiled elementwise kernel."""
    N, OH, OW, C = y.shape
    m = N * OH * OW
    tot = jnp.sum(s, axis=(0, 1, 2))
    tot2 = jnp.sum(sq, axis=(0, 1, 2))
    mean = tot / m
    # TODO(synk): E[x^2]-E[x]^2 in f32; a two-pass / Welford reduction would be
    # more robust for very large-magnitude activations.
    var = jnp.maximum(tot2 / m - mean * mean, 0.0)
    scale = gamma / jnp.sqrt(var + eps)
    bias = beta - mean * scale

    # Lane-dense layout for narrow-channel stages (C=64): pack 2 spatial positions
    # per 128-lane row so stores are unmasked full-lane vst.
    if C < 128 and 128 % C == 0 and y.size % 128 == 0:
        cw = 128
    else:
        cw = C
    rep = cw // C
    y2 = y.reshape(-1, cw)
    scale2 = jnp.tile(scale, rep).reshape(1, cw)
    bias2 = jnp.tile(bias, rep).reshape(1, cw)

    M2 = y2.shape[0]
    tm = _pick_row_tile(M2)
    spec_x = pl.BlockSpec((tm, cw), lambda i: (i, 0))
    spec_c = pl.BlockSpec((1, cw), lambda i: (0, 0))
    if residual is None:
        kern = functools.partial(_bn_act_kernel, relu=relu)
        in_specs = [spec_x, spec_c, spec_c]
        args = (y2, scale2, bias2)
    else:
        kern = functools.partial(_bn_add_act_kernel, relu=relu)
        in_specs = [spec_x, spec_c, spec_c, spec_x]
        args = (y2, scale2, bias2, residual.reshape(-1, cw))
    out = pl.pallas_call(
        kern,
        out_shape=jax.ShapeDtypeStruct((M2, cw), out_dtype),
        grid=(M2 // tm,),
        in_specs=in_specs,
        out_specs=spec_x,
        compiler_params=pltpu.CompilerParams(
            dimension_semantics=("parallel",),
            vmem_limit_bytes=_VMEM_LIMIT_BYTES),
    )(*args)
    return out.reshape(N, OH, OW, C)


def maxpool_3x3_s2_p1(x):
    N, H, W, C = x.shape
    OH = (H - 1) // 2 + 1
    OW = (W - 1) // 2 + 1
    xph, wphase = _phase_layout(x, 2, 1, pad_value=-jnp.inf)   # PyTorch pads with -inf
    kern = functools.partial(_maxpool_row_kernel, ow=OW)
    return pl.pallas_call(
        kern,
        out_shape=jax.ShapeDtypeStruct((N, OH, OW, C), x.dtype),
        grid_spec=pltpu.PrefetchScalarGridSpec(
            num_scalar_prefetch=0,
            grid=(N, OH, 3),
            in_specs=[pl.BlockSpec((1, 1, 2, wphase, C),
                                   lambda n, oh, kh: (n, 2 * oh + kh, 0, 0, 0))],
            out_specs=pl.BlockSpec((1, 1, OW, C), lambda n, oh, kh: (n, oh, 0, 0))),
        compiler_params=pltpu.CompilerParams(
            dimension_semantics=("parallel", "parallel", "arbitrary"),
            vmem_limit_bytes=_VMEM_LIMIT_BYTES),
    )(xph)


def conv_bn_act(x, w, gamma, beta, stride, pad, relu, residual=None):
    """conv (no bias) -> BatchNorm (training-mode batch stats) -> [+residual] -> [ReLU]."""
    y, s, sq = conv2d_bn_stats(x, w, stride, pad)
    return bn_apply(y, s, sq, gamma, beta, relu, residual=residual)


def basic_block(x, blk):
    """torchvision BasicBlock: conv3x3-bn-relu, conv3x3-bn, +identity(/downsample), relu."""
    s = blk['stride']
    identity = x
    out = conv_bn_act(x, blk['conv1_w'], blk['bn1_g'], blk['bn1_b'],
                      stride=s, pad=1, relu=True)
    if 'ds_w' in blk:
        identity = conv_bn_act(x, blk['ds_w'], blk['ds_g'], blk['ds_b'],
                               stride=s, pad=0, relu=False)
    out = conv_bn_act(out, blk['conv2_w'], blk['bn2_g'], blk['bn2_b'],
                      stride=1, pad=1, relu=True, residual=identity)
    return out


# ----------------------------------------------------------------------------- model
def init_params(key, layers=(1, 1, 1, 1)):
    keys = iter(jax.random.split(key, 256))

    def conv_w(cout, cin, kh, kw):
        # kaiming_normal_(mode='fan_out', nonlinearity='relu'); pre-transposed to the
        # MXU-ready (KH, KW, Cin, Cout) layout and pre-cast to bf16 once, outside the
        # per-forward path.
        fan_out = cout * kh * kw
        std = (2.0 / fan_out) ** 0.5
        w = jax.random.normal(next(keys), (cout, cin, kh, kw), jnp.float32) * std
        return jnp.transpose(w, (2, 3, 1, 0)).astype(jnp.bfloat16)

    def bn(c):
        # TODO(synk): the reference __init__ sets BN weight to 1 and then 0 (a bug that
        # zeroes every activation); use standard gamma=1, beta=0 so the forward is
        # non-trivial.
        return jnp.ones((c,), jnp.float32), jnp.zeros((c,), jnp.float32)

    params = {'conv1_w': conv_w(64, 3, 7, 7)}
    params['bn1_g'], params['bn1_b'] = bn(64)

    inplanes = 64
    plan = [(64, layers[0], 1), (128, layers[1], 2),
            (256, layers[2], 2), (512, layers[3], 2)]
    layer_params = []
    for planes, nblocks, stride in plan:
        blocks = []
        for bi in range(nblocks):
            s = stride if bi == 0 else 1
            blk = {'stride': s,
                   'conv1_w': conv_w(planes, inplanes, 3, 3),
                   'conv2_w': conv_w(planes, planes, 3, 3)}
            blk['bn1_g'], blk['bn1_b'] = bn(planes)
            blk['bn2_g'], blk['bn2_b'] = bn(planes)
            if s != 1 or inplanes != planes:              # BasicBlock.expansion == 1
                blk['ds_w'] = conv_w(planes, inplanes, 1, 1)
                blk['ds_g'], blk['ds_b'] = bn(planes)
            blocks.append(blk)
            inplanes = planes
        layer_params.append(blocks)
    params['layers'] = layer_params
    return params


def resnet_forward(x_nchw, params):
    # API boundary is NCHW (PyTorch); kernels run on NHWC-derived slabs, bf16 activations.
    x = jnp.transpose(x_nchw, (0, 2, 3, 1)).astype(jnp.bfloat16)      # -> NHWC bf16
    x = conv_bn_act(x, params['conv1_w'], params['bn1_g'], params['bn1_b'],
                    stride=2, pad=3, relu=True)
    x = maxpool_3x3_s2_p1(x)
    for blocks in params['layers']:
        for blk in blocks:
            x = basic_block(x, blk)
    # reference forward ends at layer4 (no avgpool / fc in the spec's forward)
    return jnp.transpose(x.astype(jnp.float32), (0, 3, 1, 2))         # -> NCHW f32


# ----------------------------------------------------------------------------- main
if __name__ == "__main__":
    key = jax.random.PRNGKey(0)
    pkey, xkey = jax.random.split(key)
    params = init_params(pkey, layers=(1, 1, 1, 1))

    x = jax.random.normal(xkey, (2, 3, 16, 16), jnp.float32)          # NCHW input
    out = resnet_forward(x, params)
    out = jax.block_until_ready(out)

    assert out.shape == (2, 512, 1, 1), out.shape
    assert bool(jnp.all(jnp.isfinite(out)))
    print("KERNEL_OK")
</pallas_src>

<mosaic_0001>
module attributes {stable_mosaic.version = 11 : i64} {
  func.func @_conv_row_kernel(%arg0: i32, %arg1: i32, %arg2: i32, %arg3: memref<1x1x2x11x8xbf16, #tpu.memory_space<vmem>>, %arg4: memref<7x7x8x64xbf16, #tpu.memory_space<vmem>>, %arg5: memref<1x1x8x64xf32, #tpu.memory_space<vmem>>, %arg6: memref<1x1x1x64xf32, #tpu.memory_space<vmem>>, %arg7: memref<1x1x1x64xf32, #tpu.memory_space<vmem>>) attributes {dimension_semantics = [#tpu.dimension_semantics<parallel>, #tpu.dimension_semantics<parallel>, #tpu.dimension_semantics<arbitrary>], iteration_bounds = array<i64: 2, 8, 7>, scalar_prefetch = 0 : i64, scratch_operands = 0 : i64, tpu.core_type = #tpu.core_type<tc>, window_params = [{transform_indices = @transform_0, window_bounds = array<i64: 1, 1, 2, 11, 8>}, {pipeline_mode = #tpu.pipeline_mode<synchronous>, transform_indices = @transform_1, window_bounds = array<i64: 7, 7, 8, 64>}, {transform_indices = @transform_2, window_bounds = array<i64: 1, 1, 8, 64>}, {transform_indices = @transform_3, window_bounds = array<i64: 1, 1, 1, 64>}, {transform_indices = @transform_4, window_bounds = array<i64: 1, 1, 1, 64>}]} {
    %c0_i32 = arith.constant 0 : i32
    %0 = arith.cmpi eq, %arg2, %c0_i32 : i32
    %1 = arith.extui %0 : i1 to i32
    %c0_i32_0 = arith.constant 0 : i32
    %2 = arith.cmpi ne, %1, %c0_i32_0 : i32
    scf.if %2 {
      %cst_66 = arith.constant 0.000000e+00 : f32
      %60 = vector.broadcast %cst_66 : f32 to vector<1x1x8x64xf32>
      %c0_67 = arith.constant 0 : index
      %c0_68 = arith.constant 0 : index
      %c0_69 = arith.constant 0 : index
      %c0_70 = arith.constant 0 : index
      %61 = vector.load %arg5[%c0_67, %c0_68, %c0_69, %c0_70] : memref<1x1x8x64xf32, #tpu.memory_space<vmem>>, vector<1x1x8x64xf32>
      tpu.vector_store %arg5[%c0_67, %c0_68, %c0_69, %c0_70], %60 {strides = array<i32>} : memref<1x1x8x64xf32, #tpu.memory_space<vmem>>, vector<1x1x8x64xf32>,
    } else {
    }
    %cst = arith.constant 0.000000e+00 : f32
    %3 = vector.broadcast %cst : f32 to vector<8x64xf32>
    %c0 = arith.constant 0 : index
    %c0_1 = arith.constant 0 : index
    %c0_2 = arith.constant 0 : index
    %c0_3 = arith.constant 0 : index
    %c0_4 = arith.constant 0 : index
    %4 = vector.load %arg3[%c0, %c0_1, %c0_2, %c0_3, %c0_4] : memref<1x1x2x11x8xbf16, #tpu.memory_space<vmem>>, vector<1x1x1x8x8xbf16>
    %5 = vector.shape_cast %4 : vector<1x1x1x8x8xbf16> to vector<8x8xbf16>
    %6 = arith.index_cast %arg2 : i32 to index
    %c0_5 = arith.constant 0 : index
    %c0_6 = arith.constant 0 : index
    %c0_7 = arith.constant 0 : index
    %7 = vector.load %arg4[%6, %c0_5, %c0_6, %c0_7] : memref<7x7x8x64xbf16, #tpu.memory_space<vmem>>, vector<1x1x8x64xbf16>
    %8 = vector.shape_cast %7 : vector<1x1x8x64xbf16> to vector<8x64xbf16>
    %cst_8 = arith.constant dense<0.000000e+00> : vector<8x64xf32>
    %9 = tpu.matmul %5, %8, %cst_8 {dimension_numbers = #tpu.dot_dimension_numbers<[1], [0], [0], [1], [0, 0, 1, 1], [], []>} : vector<8x8xbf16>, vector<8x64xbf16>, vector<8x64xf32> -> vector<8x64xf32>
    %10 = arith.addf %3, %9 : vector<8x64xf32>
    %c0_9 = arith.constant 0 : index
    %c0_10 = arith.constant 0 : index
    %c1 = arith.constant 1 : index
    %c0_11 = arith.constant 0 : index
    %c0_12 = arith.constant 0 : index
    %11 = vector.load %arg3[%c0_9, %c0_10, %c1, %c0_11, %c0_12] : memref<1x1x2x11x8xbf16, #tpu.memory_space<vmem>>, vector<1x1x1x8x8xbf16>
    %12 = vector.shape_cast %11 : vector<1x1x1x8x8xbf16> to vector<8x8xbf16>
    %13 = arith.index_cast %arg2 : i32 to index
    %c1_13 = arith.constant 1 : index
    %c0_14 = arith.constant 0 : index
    %c0_15 = arith.constant 0 : index
    %14 = vector.load %arg4[%13, %c1_13, %c0_14, %c0_15] : memref<7x7x8x64xbf16, #tpu.memory_space<vmem>>, vector<1x1x8x64xbf16>
    %15 = vector.shape_cast %14 : vector<1x1x8x64xbf16> to vector<8x64xbf16>
    %cst_16 = arith.constant dense<0.000000e+00> : vector<8x64xf32>
    %16 = tpu.matmul %12, %15, %cst_16 {dimension_numbers = #tpu.dot_dimension_numbers<[1], [0], [0], [1], [0, 0, 1, 1], [], []>} : vector<8x8xbf16>, vector<8x64xbf16>, vector<8x64xf32> -> vector<8x64xf32>
    %17 = arith.addf %10, %16 : vector<8x64xf32>
    %c0_17 = arith.constant 0 : index
    %c0_18 = arith.constant 0 : index
    %c0_19 = arith.constant 0 : index
    %c1_20 = arith.constant 1 : index
    %c0_21 = arith.constant 0 : index
    %18 = vector.load %arg3[%c0_17, %c0_18, %c0_19, %c1_20, %c0_21] : memref<1x1x2x11x8xbf16, #tpu.memory_space<vmem>>, vector<1x1x1x8x8xbf16>
    %19 = vector.shape_cast %18 : vector<1x1x1x8x8xbf16> to vector<8x8xbf16>
    %20 = arith.index_cast %arg2 : i32 to index
    %c2 = arith.constant 2 : index
    %c0_22 = arith.constant 0 : index
    %c0_23 = arith.constant 0 : index
    %21 = vector.load %arg4[%20, %c2, %c0_22, %c0_23] : memref<7x7x8x64xbf16, #tpu.memory_space<vmem>>, vector<1x1x8x64xbf16>
    %22 = vector.shape_cast %21 : vector<1x1x8x64xbf16> to vector<8x64xbf16>
    %cst_24 = arith.constant dense<0.000000e+00> : vector<8x64xf32>
    %23 = tpu.matmul %19, %22, %cst_24 {dimension_numbers = #tpu.dot_dimension_numbers<[1], [0], [0], [1], [0, 0, 1, 1], [], []>} : vector<8x8xbf16>, vector<8x64xbf16>, vector<8x64xf32> -> vector<8x64xf32>
    %24 = arith.addf %17, %23 : vector<8x64xf32>
    %c0_25 = arith.constant 0 : index
    %c0_26 = arith.constant 0 : index
    %c1_27 = arith.constant 1 : index
    %c1_28 = arith.constant 1 : index
    %c0_29 = arith.constant 0 : index
    %25 = vector.load %arg3[%c0_25, %c0_26, %c1_27, %c1_28, %c0_29] : memref<1x1x2x11x8xbf16, #tpu.memory_space<vmem>>, vector<1x1x1x8x8xbf16>
    %26 = vector.shape_cast %25 : vector<1x1x1x8x8xbf16> to vector<8x8xbf16>
    %27 = arith.index_cast %arg2 : i32 to index
    %c3 = arith.constant 3 : index
    %c0_30 = arith.constant 0 : index
    %c0_31 = arith.constant 0 : index
    %28 = vector.load %arg4[%27, %c3, %c0_30, %c0_31] : memref<7x7x8x64xbf16, #tpu.memory_space<vmem>>, vector<1x1x8x64xbf16>
    %29 = vector.shape_cast %28 : vector<1x1x8x64xbf16> to vector<8x64xbf16>
    %cst_32 = arith.constant dense<0.000000e+00> : vector<8x64xf32>
    %30 = tpu.matmul %26, %29, %cst_32 {dimension_numbers = #tpu.dot_dimension_numbers<[1], [0], [0], [1], [0, 0, 1, 1], [], []>} : vector<8x8xbf16>, vector<8x64xbf16>, vector<8x64xf32> -> vector<8x64xf32>
    %31 = arith.addf %24, %30 : vector<8x64xf32>
    %c0_33 = arith.constant 0 : index
    %c0_34 = arith.constant 0 : index
    %c0_35 = arith.constant 0 : index
    %c2_36 = arith.constant 2 : index
    %c0_37 = arith.constant 0 : index
    %32 = vector.load %arg3[%c0_33, %c0_34, %c0_35, %c2_36, %c0_37] : memref<1x1x2x11x8xbf16, #tpu.memory_space<vmem>>, vector<1x1x1x8x8xbf16>
    %33 = vector.shape_cast %32 : vector<1x1x1x8x8xbf16> to vector<8x8xbf16>
    %34 = arith.index_cast %arg2 : i32 to index
    %c4 = arith.constant 4 : index
    %c0_38 = arith.constant 0 : index
    %c0_39 = arith.constant 0 : index
    %35 = vector.load %arg4[%34, %c4, %c0_38, %c0_39] : memref<7x7x8x64xbf16, #tpu.memory_space<vmem>>, vector<1x1x8x64xbf16>
    %36 = vector.shape_cast %35 : vector<1x1x8x64xbf16> to vector<8x64xbf16>
    %cst_40 = arith.constant dense<0.000000e+00> : vector<8x64xf32>
    %37 = tpu.matmul %33, %36, %cst_40 {dimension_numbers = #tpu.dot_dimension_numbers<[1], [0], [0], [1], [0, 0, 1, 1], [], []>} : vector<8x8xbf16>, vector<8x64xbf16>, vector<8x64xf32> -> vector<8x64xf32>
    %38 = arith.addf %31, %37 : vector<8x64xf32>
    %c0_41 = arith.constant 0 : index
    %c0_42 = arith.constant 0 : index
    %c1_43 = arith.constant 1 : index
    %c2_44 = arith.constant 2 : index
    %c0_45 = arith.constant 0 : index
    %39 = vector.load %arg3[%c0_41, %c0_42, %c1_43, %c2_44, %c0_45] : memref<1x1x2x11x8xbf16, #tpu.memory_space<vmem>>, vector<1x1x1x8x8xbf16>
    %40 = vector.shape_cast %39 : vector<1x1x1x8x8xbf16> to vector<8x8xbf16>
    %41 = arith.index_cast %arg2 : i32 to index
    %c5 = arith.constant 5 : index
    %c0_46 = arith.constant 0 : index
    %c0_47 = arith.constant 0 : index
    %42 = vector.load %arg4[%41, %c5, %c0_46, %c0_47] : memref<7x7x8x64xbf16, #tpu.memory_space<vmem>>, vector<1x1x8x64xbf16>
    %43 = vector.shape_cast %42 : vector<1x1x8x64xbf16> to vector<8x64xbf16>
    %cst_48 = arith.constant dense<0.000000e+00> : vector<8x64xf32>
    %44 = tpu.matmul %40, %43, %cst_48 {dimension_numbers = #tpu.dot_dimension_numbers<[1], [0], [0], [1], [0, 0, 1, 1], [], []>} : vector<8x8xbf16>, vector<8x64xbf16>, vector<8x64xf32> -> vector<8x64xf32>
    %45 = arith.addf %38, %44 : vector<8x64xf32>
    %c0_49 = arith.constant 0 : index
    %c0_50 = arith.constant 0 : index
    %c0_51 = arith.constant 0 : index
    %c3_52 = arith.constant 3 : index
    %c0_53 = arith.constant 0 : index
    %46 = vector.load %arg3[%c0_49, %c0_50, %c0_51, %c3_52, %c0_53] : memref<1x1x2x11x8xbf16, #tpu.memory_space<vmem>>, vector<1x1x1x8x8xbf16>
    %47 = vector.shape_cast %46 : vector<1x1x1x8x8xbf16> to vector<8x8xbf16>
    %48 = arith.index_cast %arg2 : i32 to index
    %c6 = arith.constant 6 : index
    %c0_54 = arith.constant 0 : index
    %c0_55 = arith.constant 0 : index
    %49 = vector.load %arg4[%48, %c6, %c0_54, %c0_55] : memref<7x7x8x64xbf16, #tpu.memory_space<vmem>>, vector<1x1x8x64xbf16>
    %50 = vector.shape_cast %49 : vector<1x1x8x64xbf16> to vector<8x64xbf16>
    %cst_56 = arith.constant dense<0.000000e+00> : vector<8x64xf32>
    %51 = tpu.matmul %47, %50, %cst_56 {dimension_numbers = #tpu.dot_dimension_numbers<[1], [0], [0], [1], [0, 0, 1, 1], [], []>} : vector<8x8xbf16>, vector<8x64xbf16>, vector<8x64xf32> -> vector<8x64xf32>
    %52 = arith.addf %45, %51 : vector<8x64xf32>
    %c0_57 = arith.constant 0 : index
    %c0_58 = arith.constant 0 : index
    %c0_59 = arith.constant 0 : index
    %c0_60 = arith.constant 0 : index
    %53 = vector.load %arg5[%c0_57, %c0_58, %c0_59, %c0_60] : memref<1x1x8x64xf32, #tpu.memory_space<vmem>>, vector<1x1x8x64xf32>
    %54 = vector.shape_cast %52 : vector<8x64xf32> to vector<1x1x8x64xf32>
    %55 = arith.addf %53, %54 : vector<1x1x8x64xf32>
    %c0_61 = arith.constant 0 : index
    %c0_62 = arith.constant 0 : index
    %c0_63 = arith.constant 0 : index
    %c0_64 = arith.constant 0 : index
    %56 = vector.load %arg5[%c0_61, %c0_62, %c0_63, %c0_64] : memref<1x1x8x64xf32, #tpu.memory_space<vmem>>, vector<1x1x8x64xf32>
    tpu.vector_store %arg5[%c0_61, %c0_62, %c0_63, %c0_64], %55 {strides = array<i32>} : memref<1x1x8x64xf32, #tpu.memory_space<vmem>>, vector<1x1x8x64xf32>,
    %c6_i32 = arith.constant 6 : i32
    %57 = arith.cmpi eq, %arg2, %c6_i32 : i32
    %58 = arith.extui %57 : i1 to i32
    %c0_i32_65 = arith.constant 0 : i32
    %59 = arith.cmpi ne, %58, %c0_i32_65 : i32
    scf.if %59 {
      %c0_66 = arith.constant 0 : index
      %c0_67 = arith.constant 0 : index
      %c0_68 = arith.constant 0 : index
      %c0_69 = arith.constant 0 : index
      %60 = vector.load %arg5[%c0_66, %c0_67, %c0_68, %c0_69] : memref<1x1x8x64xf32, #tpu.memory_space<vmem>>, vector<1x1x8x64xf32>
      %61 = vector.shape_cast %60 : vector<1x1x8x64xf32> to vector<8x64xf32>
      %cst_70 = arith.constant dense<0.000000e+00> : vector<64xf32>
      %62 = vector.multi_reduction <add>, %61, %cst_70 [0] : vector<8x64xf32> to vector<64xf32>
      %63 = vector.shape_cast %62 : vector<64xf32> to vector<1x64xf32>
      %c0_71 = arith.constant 0 : index
      %c0_72 = arith.constant 0 : index
      %c0_73 = arith.constant 0 : index
      %c0_74 = arith.constant 0 : index
      %64 = vector.load %arg6[%c0_71, %c0_72, %c0_73, %c0_74] : memref<1x1x1x64xf32, #tpu.memory_space<vmem>>, vector<1x1x1x64xf32>
      %65 = vector.shape_cast %64 : vector<1x1x1x64xf32> to vector<1x64xf32>
      %66 = vector.shape_cast %63 : vector<1x64xf32> to vector<1x1x1x64xf32>
      tpu.vector_store %arg6[%c0_71, %c0_72, %c0_73, %c0_74], %66 {strides = array<i32>} : memref<1x1x1x64xf32, #tpu.memory_space<vmem>>, vector<1x1x1x64xf32>,
      %67 = arith.mulf %61, %61 : vector<8x64xf32>
      %cst_75 = arith.constant dense<0.000000e+00> : vector<64xf32>
      %68 = vector.multi_reduction <add>, %67, %cst_75 [0] : vector<8x64xf32> to vector<64xf32>
      %69 = vector.shape_cast %68 : vector<64xf32> to vector<1x64xf32>
      %c0_76 = arith.constant 0 : index
      %c0_77 = arith.constant 0 : index
      %c0_78 = arith.constant 0 : index
      %c0_79 = arith.constant 0 : index
      %70 = vector.load %arg7[%c0_76, %c0_77, %c0_78, %c0_79] : memref<1x1x1x64xf32, #tpu.memory_space<vmem>>, vector<1x1x1x64xf32>
      %71 = vector.shape_cast %70 : vector<1x1x1x64xf32> to vector<1x64xf32>
      %72 = vector.shape_cast %69 : vector<1x64xf32> to vector<1x1x1x64xf32>
      tpu.vector_store %arg7[%c0_76, %c0_77, %c0_78, %c0_79], %72 {strides = array<i32>} : memref<1x1x1x64xf32, #tpu.memory_space<vmem>>, vector<1x1x1x64xf32>,
    } else {
    }
    return
  }
  func.func @transform_0(%arg0: i32, %arg1: i32, %arg2: i32) -> (i32, i32, i32, i32, i32) {
    %c2_i32 = arith.constant 2 : i32
    %0 = arith.muli %c2_i32, %arg1 : i32
    %1 = arith.addi %0, %arg2 : i32
    %c0_i32 = arith.constant 0 : i32
    %c0_i32_0 = arith.constant 0 : i32
    %c0_i32_1 = arith.constant 0 : i32
    %c0_i32_2 = arith.constant 0 : i32
    return %arg0, %1, %c0_i32, %c0_i32_0, %c0_i32_1 : i32, i32, i32, i32, i32
  }
  func.func @transform_1(%arg0: i32, %arg1: i32, %arg2: i32) -> (i32, i32, i32, i32) {
    %c0_i32 = arith.constant 0 : i32
    %c0_i32_0 = arith.constant 0 : i32
    %c0_i32_1 = arith.constant 0 : i32
    %c0_i32_2 = arith.constant 0 : i32
    %c0_i32_3 = arith.constant 0 : i32
    return %c0_i32, %c0_i32_0, %c0_i32_1, %c0_i32_2 : i32, i32, i32, i32
  }
  func.func @transform_2(%arg0: i32, %arg1: i32, %arg2: i32) -> (i32, i32, i32, i32) {
    %c0_i32 = arith.constant 0 : i32
    %c0_i32_0 = arith.constant 0 : i32
    %c0_i32_1 = arith.constant 0 : i32
    return %arg0, %arg1, %c0_i32, %c0_i32_0 : i32, i32, i32, i32
  }
  func.func @transform_3(%arg0: i32, %arg1: i32, %arg2: i32) -> (i32, i32, i32, i32) {
    %c0_i32 = arith.constant 0 : i32
    %c0_i32_0 = arith.constant 0 : i32
    %c0_i32_1 = arith.constant 0 : i32
    return %arg0, %arg1, %c0_i32, %c0_i32_0 : i32, i32, i32, i32
  }
  func.func @transform_4(%arg0: i32, %arg1: i32, %arg2: i32) -> (i32, i32, i32, i32) {
    %c0_i32 = arith.constant 0 : i32
    %c0_i32_0 = arith.constant 0 : i32
    %c0_i32_1 = arith.constant 0 : i32
    return %arg0, %arg1, %c0_i32, %c0_i32_0 : i32, i32, i32, i32
  }
}

</mosaic_0001>

<llo_original>
// kernel: tpu_custom_call.1
$region0: #{tpu_custom_call.1}
  #allocation0 [shape = 'u32[]', space=smem, size = 0x4, offset = 0x4, fixed_abs, tag = 'smem constant byte address 0x4 - core index']
  #allocation1 [shape = 'u32[144,128]{1,0:T(1,128)}', space=vmem, size = 0x12000, scoped, tag = 'internal scratch']
  %s0 = inlined_call_operand.vmem [shape: bf16[2,22,2,11,8], index: 0, kind: input, shape index: {}]
  %s1 = inlined_call_operand.vmem [shape: bf16[7,7,8,64], index: 1, kind: input, shape index: {}]
  %s2 = inlined_call_operand.hbm [shape: f32[2,8,8,64], index: 2, kind: output, shape index: {0}]
  %s3 = inlined_call_operand.hbm [shape: f32[2,8,1,64], index: 3, kind: output, shape index: {1}]
  %s4 = inlined_call_operand.hbm [shape: f32[2,8,1,64], index: 4, kind: output, shape index: {2}]
  %5 = xla_tuple %s2, %s3, %s4
  %s6 = sld [smem:[#allocation0]]
  $region65: #{tpu_custom_call.1} parent=0
    _
  %s8 = ssub.s32 1, %s6
  %s9 = scalar_select 0, %s8, %s6
  $region1: #{tpu_custom_call.1} parent=0
    #allocation2 [shape = 'u8[8192]{0}', space=vmem, size = 0x2000, scoped, tag = 'output window, operand 0']
    #allocation3 [shape = 's32[2]{0}', space=sflag, size = 0x8, scoped, tag = 'scoped memory for tpu_custom_call.1']
    #allocation4 [shape = 'u8[1024]{0}', space=vmem, size = 0x400, scoped, tag = 'output window, operand 1']
    #allocation5 [shape = 's32[2]{0}', space=sflag, size = 0x8, scoped, tag = 'scoped memory for tpu_custom_call.1']
    #allocation6 [shape = 'u8[1024]{0}', space=vmem, size = 0x400, scoped, tag = 'output window, operand 2']
    %10 = vsyncpa [#allocation3], 0
    %s11 = scalar_lea.sflag [#allocation3], 1
    %12 = vsyncpa %s11, 0
    %13 = vsyncpa [#allocation5], 0
    %s14 = scalar_lea.sflag [#allocation5], 1
    %15 = vsyncpa %s14, 0
    loop: start=0, step=1, limit=114
    $region2: #{tpu_custom_call.1} parent=1 // loop_pre_header
      _
    $region3: #{tpu_custom_call.1} parent=1 // loop_header
      %s17 = sphi 0, %s21
      %p18 = scmp.ge.s32.totalorder %s17, 114
      %s24 = sphi 0, %s43
      %s25 = sphi 0, %s39
      %s26 = sphi 0, %s35
      %s27 = sphi 0, %s24
      %s28 = sphi 0, %s25
      %s29 = sphi 0, %s26
      %s30 = sphi 0, %s27
      %s31 = sphi 0, %s28
      %s32 = sphi 0, %s29
      %s52 = sphi 0, %s54
      %s55 = sphi 0, %s52
      %s56 = sphi 0, %s55
      %s72 = sphi 0, %s56
      %s76 = sphi 0, %s76
      %s78 = sphi 0, %s76
      %s79 = sphi 0, %s78
      %s93 = sphi 0, %s79
      %s101 = sphi 0, %s103
      %s104 = sphi 0, %s101
      %s105 = sphi 0, %s104
      %s121 = sphi 0, %s105
      %s129 = sphi 0, %s131
      %s132 = sphi 0, %s129
      %s133 = sphi 0, %s132
      %s149 = sphi 0, %s133
      %s157 = sphi 0, %s159
      %s160 = sphi 0, %s157
      %s161 = sphi 0, %s160
      %s177 = sphi 0, %s161
    $region4: #{tpu_custom_call.1} parent=1 // loop_header_branch
      %20 = sbr.rel (%p18) target = $region8
    $region5: #{tpu_custom_call.1} parent=1 // loop_body
      %s22 = ssub.s32 %s17, 1
      %s23 = ssub.s32 %s17, 2
      %s33 = sadd.s32 1, %s26
      %p34 = scmp.ge.s32.totalorder %s33, 7
      %s35 = scalar_select %p34, 0, %s33
      %s36 = sadd.s32 1, %s25
      %s37 = scalar_select %p34, %s36, %s25
      %p38 = scmp.ge.s32.totalorder %s37, 8
      %s39 = scalar_select %p38, 0, %s37
      %s40 = sadd.s32 1, %s24
      %s41 = scalar_select %p38, %s40, %s24
      %p42 = scmp.ge.s32.totalorder %s41, 2
      %s43 = scalar_select %p42, 0, %s41
      %s44 = smul.u32 %s25, 2
      %s45 = sadd.s32 %s44, %s26
      %s46 = smul.u32 %s39, 2
      %s47 = sadd.s32 %s46, %s35
      %s48 = ssub.s32 %s24, %s43
      %s49 = ssub.s32 %s45, %s47
      %s50 = sor.u32 %s48, %s49
      %p51 = scmp.eq.s32.totalorder %s50, 0
      %s53 = sadd.s32 %s52, 1
      %s54 = scalar_select %p51, %s52, %s53
      %p57 = pneg %p51
      %p58 = scmp.eq.s32.totalorder %s17, 111
      %p59 = por %p57, %p58
      %p60 = scmp.ne.s32.totalorder %s52, %s55
      %p61 = scmp.eq.s32.totalorder %s17, 0
      %p62 = por %p60, %p61
      %p63 = scmp.ne.s32.totalorder %s52, %s55
      %p64 = scmp.eq.s32.totalorder %s22, 111
      %p65 = por %p63, %p64
      %p66 = scmp.ne.s32.totalorder %s55, %s56
      %p67 = scmp.eq.s32.totalorder %s22, 0
      %p68 = por %p66, %p67
      %p69 = scmp.ne.s32.totalorder %s55, %s56
      %p70 = scmp.eq.s32.totalorder %s23, 111
      %p71 = por %p69, %p70
      %p73 = scmp.ne.s32.totalorder %s56, %s72
      %p74 = scmp.eq.s32.totalorder %s23, 0
      %p75 = por %p73, %p74
      %s77 = sadd.s32 %s76, 1
      %p80 = scmp.eq.s32.totalorder %s17, 111
      %p81 = scmp.ne.s32.totalorder %s76, %s78
      %p82 = scmp.eq.s32.totalorder %s17, 0
      %p83 = por %p81, %p82
      %p84 = scmp.ne.s32.totalorder %s76, %s78
      %p85 = scmp.eq.s32.totalorder %s22, 111
      %p86 = por %p84, %p85
      %p87 = scmp.ne.s32.totalorder %s78, %s79
      %p88 = scmp.eq.s32.totalorder %s22, 0
      %p89 = por %p87, %p88
      %p90 = scmp.ne.s32.totalorder %s78, %s79
      %p91 = scmp.eq.s32.totalorder %s23, 111
      %p92 = por %p90, %p91
      %p94 = scmp.ne.s32.totalorder %s79, %s93
      %p95 = scmp.eq.s32.totalorder %s23, 0
      %p96 = por %p94, %p95
      %s97 = ssub.s32 %s24, %s43
      %s98 = ssub.s32 %s25, %s39
      %s99 = sor.u32 %s97, %s98
      %p100 = scmp.eq.s32.totalorder %s99, 0
      %s102 = sadd.s32 %s101, 1
      %s103 = scalar_select %p100, %s101, %s102
      %p106 = pneg %p100
      %p107 = scmp.eq.s32.totalorder %s17, 111
      %p108 = por %p106, %p107
      %p109 = scmp.ne.s32.totalorder %s101, %s104
      %p110 = scmp.eq.s32.totalorder %s17, 0
      %p111 = por %p109, %p110
      %p112 = scmp.ne.s32.totalorder %s101, %s104
      %p113 = scmp.eq.s32.totalorder %s22, 111
      %p114 = por %p112, %p113
      %p115 = scmp.ne.s32.totalorder %s104, %s105
      %p116 = scmp.eq.s32.totalorder %s22, 0
      %p117 = por %p115, %p116
      %p118 = scmp.ne.s32.totalorder %s104, %s105
      %p119 = scmp.eq.s32.totalorder %s23, 111
      %p120 = por %p118, %p119
      %p122 = scmp.ne.s32.totalorder %s105, %s121
      %p123 = scmp.eq.s32.totalorder %s23, 0
      %p124 = por %p122, %p123
      %s125 = ssub.s32 %s24, %s43
      %s126 = ssub.s32 %s25, %s39
      %s127 = sor.u32 %s125, %s126
      %p128 = scmp.eq.s32.totalorder %s127, 0
      %s130 = sadd.s32 %s129, 1
      %s131 = scalar_select %p128, %s129, %s130
      %p134 = pneg %p128
      %p135 = scmp.eq.s32.totalorder %s17, 111
      %p136 = por %p134, %p135
      %p137 = scmp.ne.s32.totalorder %s129, %s132
      %p138 = scmp.eq.s32.totalorder %s17, 0
      %p139 = por %p137, %p138
      %p140 = scmp.ne.s32.totalorder %s129, %s132
      %p141 = scmp.eq.s32.totalorder %s22, 111
      %p142 = por %p140, %p141
      %p143 = scmp.ne.s32.totalorder %s132, %s133
      %p144 = scmp.eq.s32.totalorder %s22, 0
      %p145 = por %p143, %p144
      %p146 = scmp.ne.s32.totalorder %s132, %s133
      %p147 = scmp.eq.s32.totalorder %s23, 111
      %p148 = por %p146, %p147
      %p150 = scmp.ne.s32.totalorder %s133, %s149
      %p151 = scmp.eq.s32.totalorder %s23, 0
      %p152 = por %p150, %p151
      %s153 = ssub.s32 %s24, %s43
      %s154 = ssub.s32 %s25, %s39
      %s155 = sor.u32 %s153, %s154
      %p156 = scmp.eq.s32.totalorder %s155, 0
      %s158 = sadd.s32 %s157, 1
      %s159 = scalar_select %p156, %s157, %s158
      %p162 = pneg %p156
      %p163 = scmp.eq.s32.totalorder %s17, 111
      %p164 = por %p162, %p163
      %p165 = scmp.ne.s32.totalorder %s157, %s160
      %p166 = scmp.eq.s32.totalorder %s17, 0
      %p167 = por %p165, %p166
      %p168 = scmp.ne.s32.totalorder %s157, %s160
      %p169 = scmp.eq.s32.totalorder %s22, 111
      %p170 = por %p168, %p169
      %p171 = scmp.ne.s32.totalorder %s160, %s161
      %p172 = scmp.eq.s32.totalorder %s22, 0
      %p173 = por %p171, %p172
      %p174 = scmp.ne.s32.totalorder %s160, %s161
      %p175 = scmp.eq.s32.totalorder %s23, 111
      %p176 = por %p174, %p175
      %p178 = scmp.ne.s32.totalorder %s161, %s177
      %p179 = scmp.eq.s32.totalorder %s23, 0
      %p180 = por %p178, %p179
      %p181 = scmp.le.s32.totalorder 1, %s17
      %p182 = scmp.lt.s32.totalorder %s17, 113
      %p183 = pnand %p181, %p182
      %p184 = pneg %p183
      // Predicated region
      $region9: #{tpu_custom_call.1} parent=5 // pred_check
        _
      $region10: #{tpu_custom_call.1} parent=5 // pred_check_branch
        %186 = sbr.rel (%p183) target = $region12
      $region11: #{tpu_custom_call.1} parent=5 // pred_region
        %s187 = ssub.s32 %s17, 1
        // Predicated region
        $region13: #{tpu_custom_call.1} parent=11 // pred_check
          %p188 = pneg %p89
        $region14: #{tpu_custom_call.1} parent=11 // pred_check_branch
          %190 = sbr.rel (%p188) target = $region16
        $region15: #{tpu_custom_call.1} parent=11 // pred_region
          _
        $region16: #{tpu_custom_call.1} parent=11 // pred_fallthru
          _
      $region12: #{tpu_custom_call.1} parent=5 // pred_fallthru
        _
      %p191 = scmp.lt.s32.totalorder %s17, 112
      // Predicated region
      $region17: #{tpu_custom_call.1} parent=5 // pred_check
        %p192 = pneg %p191
      $region18: #{tpu_custom_call.1} parent=5 // pred_check_branch
        %194 = sbr.rel (%p192) target = $region20
      $region19: #{tpu_custom_call.1} parent=5 // pred_region
        // Predicated region
        $region21: #{tpu_custom_call.1} parent=19 // pred_check
          %p195 = pneg %p62
        $region22: #{tpu_custom_call.1} parent=19 // pred_check_branch
          %197 = sbr.rel (%p195) target = $region24
        $region23: #{tpu_custom_call.1} parent=19 // pred_region
          %s198 = smul.u32 %s25, 2
          %s199 = sadd.s32 %s198, %s26
          %p200 = scmp.lt.s32.totalorder %s24, 1
          %s201 = scalar_select %p200, %s24, 1
          %p202 = scmp.lt.s32.totalorder %s199, 21
          %s203 = scalar_select %p202, %s199, 21
          %s204 = smul.addr %s203, 4
          %s205 = smul.addr %s201, 88
          %s206 = sadd.s32 %s204, %s205
          %s207 = smul.addr %s206, 4
          %s208 = scalar_lea.vmem %s0, %s207
          %s209 = smul.u32 %s25, 2
          %s210 = sadd.s32 %s209, %s26
        $region24: #{tpu_custom_call.1} parent=19 // pred_fallthru
          _
      $region20: #{tpu_custom_call.1} parent=5 // pred_fallthru
        _
      %p211 = scmp.le.s32.totalorder 1, %s17
      %p212 = scmp.lt.s32.totalorder %s17, 113
      %p213 = pnand %p211, %p212
      %p214 = pneg %p213
      // Predicated region
      $region25: #{tpu_custom_call.1} parent=5 // pred_check
        _
      $region26: #{tpu_custom_call.1} parent=5 // pred_check_branch
        %216 = sbr.rel (%p213) target = $region28
      $region27: #{tpu_custom_call.1} parent=5 // pred_region
        %s217 = ssub.s32 %s17, 1
        %s218 = smul.u32 %s28, 2
        %s219 = sadd.s32 %s218, %s29
        %p220 = scmp.lt.s32.totalorder %s27, 1
        %s221 = scalar_select %p220, %s27, 1
        %p222 = scmp.lt.s32.totalorder %s219, 21
        %s223 = scalar_select %p222, %s219, 21
        %s224 = smul.addr %s223, 4
        %s225 = smul.addr %s221, 88
        %s226 = sadd.s32 %s224, %s225
        %s227 = smul.addr %s226, 4
        %s228 = scalar_lea.vmem %s0, %s227
        %p229 = pneg %p68
        %p230 = pneg %p65
        %p231 = pneg %p89
        %p232 = pneg %p86
        %p233 = pneg %p117
        %p234 = pneg %p114
        %s235 = sand.u32 %s104, 1
        %s236 = scalar_lea.sflag [#allocation3], %s235
        %s237 = sand.u32 %s104, 1
        %s238 = smul.addr %s237, 8
        %s239 = scalar_lea.vmem [#allocation2], %s238
        %p240 = pneg %p145
        %p241 = pneg %p142
        %s242 = sand.u32 %s22, 1
        %s243 = scalar_lea.sflag [#allocation5], %s242
        %s244 = sand.u32 %s132, 1
        %s245 = scalar_lea.vmem [#allocation4], %s244
        %p246 = pneg %p173
        %p247 = pneg %p170
        %s248 = sand.u32 %s22, 1
        %s249 = scalar_lea.sflag [#allocation5], %s248
        %s250 = sand.u32 %s160, 1
        %s251 = scalar_lea.vmem [#allocation6], %s250
        %s252 = smul.u32 %s28, 2
        %s253 = sadd.s32 %s252, %s29
        %p254 = scmp.lt.s32.totalorder %s27, 1
        %s255 = scalar_select %p254, %s27, 1
        %p256 = scmp.lt.s32.totalorder %s253, 21
        %s257 = scalar_select %p256, %s253, 21
        %s258 = smul.addr %s257, 4
        %s259 = smul.addr %s255, 88
        %s260 = sadd.s32 %s258, %s259
        %s261 = smul.addr %s260, 4
        %s262 = scalar_lea.vmem %s0, %s261
        %s263 = smul.u32 %s28, 2
        %s264 = sadd.s32 %s263, %s29
        %p266 = scmp.eq.s32.totalorder %s29, 0
        // Predicated region
        $region29: #{tpu_custom_call.1} parent=27 // pred_check
          %p267 = pneg %p266
        $region30: #{tpu_custom_call.1} parent=27 // pred_check_branch
          %269 = sbr.rel (%p267) target = $region32
        $region31: #{tpu_custom_call.1} parent=27 // pred_region
          %vm270 = vcmask 523264
          %271 = vst.msk [vmem:[%s239] sm:$0xff] %vm270, 0.0
        $region32: #{tpu_custom_call.1} parent=27 // pred_fallthru
          _
        %v272 = vld [vmem:[%s262] sm:$0xf]
        %s273 = smul.u32 %s29, 7
        %s274 = smul.addr %s273, 4
        %s275 = scalar_lea.vmem %s1, %s274
        %v276 = vld [vmem:[%s275] sm:$0xf]
        %s277 = scalar_lea.vmem %s262, 8
        %v278 = vld [vmem:[%s277] sm:$0xf]
        %s279 = sadd.s32 1, %s273
        %s280 = smul.addr %s279, 4
        %s281 = scalar_lea.vmem %s1, %s280
        %v282 = vld [vmem:[%s281] sm:$0xf]
        %vm283 = vcmask 64512
        %v285 = vsel %vm283, %v278, 0
        %vm287 = vcmask 1043456
        %v289 = vsel %vm287, %v282, 0
        %291 = vmatprep.subr.bf16.mxu0 0
        %292 = vmatpush1.bf16.msra.mxu0 %v289
        %293 = vmatprep.subr.bf16.mxu0 0
        %294 = vmatpush1.bf16.msra.mxu0 0
        %295 = vmatprep.subr.bf16.mxu0 0
        %296 = vmatpush1.bf16.msra.mxu0 0
        %297 = vmatprep.subr.bf16.mxu0 0
        %298 = vmatpush1.bf16.msra.mxu0 0
        %299 = vmatprep.subr.bf16.mxu0 0
        %300 = vmatpush1.bf16.msra.mxu0 0
        %301 = vmatprep.subr.bf16.mxu0 0
        %302 = vmatpush1.bf16.msra.mxu0 0
        %303 = vmatprep.subr.bf16.mxu0 0
        %304 = vmatpush1.bf16.msra.mxu0 0
        %305 = vmatprep.subr.bf16.mxu0 0
        %306 = vmatpush1.bf16.msra.mxu0 0
        %307 = vmatprep.subr.bf16.mxu0 0
        %308 = vmatpush1.bf16.msra.mxu0 0
        %309 = vmatprep.subr.bf16.mxu0 0
        %310 = vmatpush1.bf16.msra.mxu0 0
        %311 = vmatprep.subr.bf16.mxu0 0
        %312 = vmatpush1.bf16.msra.mxu0 0
        %313 = vmatprep.subr.bf16.mxu0 0
        %314 = vmatpush1.bf16.msra.mxu0 0
        %315 = vmatprep.subr.bf16.mxu0 0
        %316 = vmatpush1.bf16.msra.mxu0 0
        %317 = vmatprep.subr.bf16.mxu0 0
        %318 = vmatpush1.bf16.msra.mxu0 0
        %319 = vmatprep.subr.bf16.mxu0 0
        %320 = vmatpush1.bf16.msra.mxu0 0
        %321 = vmatprep.subr.bf16.mxu0 0
        %322 = vmatpush1.bf16.msra.mxu0 0
        %323 = vmatprep.mubr.bf16.mxu0 0
        %324 = vmatmul.mubr.bf16.gmra.mrb[0].mxu0 %v285
        %v325 = vpop.f32.mrb[0].mxu0
        %v326 = vadd.f32 0.0, %v325
        %v327 = vpop.f32.mrb[0].mxu0
        %v328 = vpop.f32.mrb[0].mxu0
        %v329 = vpop.f32.mrb[0].mxu0
        %330 = vdwg.mxu0
        %v332 = vsel %vm283, %v272, 0
        %v335 = vsel %vm287, %v276, 0
        %337 = vmatprep.subr.bf16.mxu0 0
        %338 = vmatpush1.bf16.msra.mxu0 %v335
        %339 = vmatprep.subr.bf16.mxu0 0
        %340 = vmatpush1.bf16.msra.mxu0 0
        %341 = vmatprep.subr.bf16.mxu0 0
        %342 = vmatpush1.bf16.msra.mxu0 0
        %343 = vmatprep.subr.bf16.mxu0 0
        %344 = vmatpush1.bf16.msra.mxu0 0
        %345 = vmatprep.subr.bf16.mxu0 0
        %346 = vmatpush1.bf16.msra.mxu0 0
        %347 = vmatprep.subr.bf16.mxu0 0
        %348 = vmatpush1.bf16.msra.mxu0 0
        %349 = vmatprep.subr.bf16.mxu0 0
        %350 = vmatpush1.bf16.msra.mxu0 0
        %351 = vmatprep.subr.bf16.mxu0 0
        %352 = vmatpush1.bf16.msra.mxu0 0
        %353 = vmatprep.subr.bf16.mxu0 0
        %354 = vmatpush1.bf16.msra.mxu0 0
        %355 = vmatprep.subr.bf16.mxu0 0
        %356 = vmatpush1.bf16.msra.mxu0 0
        %357 = vmatprep.subr.bf16.mxu0 0
        %358 = vmatpush1.bf16.msra.mxu0 0
        %359 = vmatprep.subr.bf16.mxu0 0
        %360 = vmatpush1.bf16.msra.mxu0 0
        %361 = vmatprep.subr.bf16.mxu0 0
        %362 = vmatpush1.bf16.msra.mxu0 0
        %363 = vmatprep.subr.bf16.mxu0 0
        %364 = vmatpush1.bf16.msra.mxu0 0
        %365 = vmatprep.subr.bf16.mxu0 0
        %366 = vmatpush1.bf16.msra.mxu0 0
        %367 = vmatprep.subr.bf16.mxu0 0
        %368 = vmatpush1.bf16.msra.mxu0 0
        %369 = vmatprep.mubr.bf16.mxu0 0
        %370 = vmatmul.mubr.bf16.gmra.mrb[0].mxu0 %v332
        %v371 = vpop.f32.mrb[0].mxu0
        %v372 = vadd.f32 %v326, %v371
        %v373 = vpop.f32.mrb[0].mxu0
        %v374 = vpop.f32.mrb[0].mxu0
        %v375 = vpop.f32.mrb[0].mxu0
        %376 = vdwg.mxu0
        %v377 = vld [vmem:[%s262] sm:$0xf]
        %v378 = vld [vmem:[%s262 + $0x4] sm:$0x1]
        %s379 = sadd.s32 2, %s273
        %s380 = smul.addr %s379, 4
        %s381 = scalar_lea.vmem %s1, %s380
        %v382 = vld [vmem:[%s381] sm:$0xf]
        %v385 = vunpack.c.l.b16 %v377
        %v386 = vunpack.c.l.b16 %v378
        %v387 = vpack.c.b16 %v386, %v385
        %v389 = vshrl.u32 %v387, 16
        %v391 = vshll.u32 %v387, 16
        %v393 = vrot.slane %v391, 1
        %v394 = vor.u32 %v389, %v393
        %v396 = vsel %vm283, %v394, 0
        %v399 = vsel %vm287, %v382, 0
        %401 = vmatprep.subr.bf16.mxu0 0
        %402 = vmatpush1.bf16.msra.mxu0 %v399
        %403 = vmatprep.subr.bf16.mxu0 0
        %404 = vmatpush1.bf16.msra.mxu0 0
        %405 = vmatprep.subr.bf16.mxu0 0
        %406 = vmatpush1.bf16.msra.mxu0 0
        %407 = vmatprep.subr.bf16.mxu0 0
        %408 = vmatpush1.bf16.msra.mxu0 0
        %409 = vmatprep.subr.bf16.mxu0 0
        %410 = vmatpush1.bf16.msra.mxu0 0
        %411 = vmatprep.subr.bf16.mxu0 0
        %412 = vmatpush1.bf16.msra.mxu0 0
        %413 = vmatprep.subr.bf16.mxu0 0
        %414 = vmatpush1.bf16.msra.mxu0 0
        %415 = vmatprep.subr.bf16.mxu0 0
        %416 = vmatpush1.bf16.msra.mxu0 0
        %417 = vmatprep.subr.bf16.mxu0 0
        %418 = vmatpush1.bf16.msra.mxu0 0
        %419 = vmatprep.subr.bf16.mxu0 0
        %420 = vmatpush1.bf16.msra.mxu0 0
        %421 = vmatprep.subr.bf16.mxu0 0
        %422 = vmatpush1.bf16.msra.mxu0 0
        %423 = vmatprep.subr.bf16.mxu0 0
        %424 = vmatpush1.bf16.msra.mxu0 0
        %425 = vmatprep.subr.bf16.mxu0 0
        %426 = vmatpush1.bf16.msra.mxu0 0
        %427 = vmatprep.subr.bf16.mxu0 0
        %428 = vmatpush1.bf16.msra.mxu0 0
        %429 = vmatprep.subr.bf16.mxu0 0
        %430 = vmatpush1.bf16.msra.mxu0 0
        %431 = vmatprep.subr.bf16.mxu0 0
        %432 = vmatpush1.bf16.msra.mxu0 0
        %433 = vmatprep.mubr.bf16.mxu0 0
        %434 = vmatmul.mubr.bf16.gmra.mrb[0].mxu0 %v396
        %v435 = vpop.f32.mrb[0].mxu0
        %v436 = vadd.f32 0.0, %v435
        %v437 = vpop.f32.mrb[0].mxu0
        %v438 = vpop.f32.mrb[0].mxu0
        %v439 = vpop.f32.mrb[0].mxu0
        %440 = vdwg.mxu0
        %v441 = vadd.f32 %v372, %v436
        %v442 = vld [vmem:[%s277] sm:$0xf]
        %v443 = vld [vmem:[%s277 + $0x4] sm:$0x1]
        %s444 = sadd.s32 3, %s273
        %s445 = smul.addr %s444, 4
        %s446 = scalar_lea.vmem %s1, %s445
        %v447 = vld [vmem:[%s446] sm:$0xf]
        %v450 = vunpack.c.l.b16 %v442
        %v451 = vunpack.c.l.b16 %v443
        %v452 = vpack.c.b16 %v451, %v450
        %v454 = vshrl.u32 %v452, 16
        %v456 = vshll.u32 %v452, 16
        %v458 = vrot.slane %v456, 1
        %v459 = vor.u32 %v454, %v458
        %v461 = vsel %vm283, %v459, 0
        %v464 = vsel %vm287, %v447, 0
        %466 = vmatprep.subr.bf16.mxu0 0
        %467 = vmatpush1.bf16.msra.mxu0 %v464
        %468 = vmatprep.subr.bf16.mxu0 0
        %469 = vmatpush1.bf16.msra.mxu0 0
        %470 = vmatprep.subr.bf16.mxu0 0
        %471 = vmatpush1.bf16.msra.mxu0 0
        %472 = vmatprep.subr.bf16.mxu0 0
        %473 = vmatpush1.bf16.msra.mxu0 0
        %474 = vmatprep.subr.bf16.mxu0 0
        %475 = vmatpush1.bf16.msra.mxu0 0
        %476 = vmatprep.subr.bf16.mxu0 0
        %477 = vmatpush1.bf16.msra.mxu0 0
        %478 = vmatprep.subr.bf16.mxu0 0
        %479 = vmatpush1.bf16.msra.mxu0 0
        %480 = vmatprep.subr.bf16.mxu0 0
        %481 = vmatpush1.bf16.msra.mxu0 0
        %482 = vmatprep.subr.bf16.mxu0 0
        %483 = vmatpush1.bf16.msra.mxu0 0
        %484 = vmatprep.subr.bf16.mxu0 0
        %485 = vmatpush1.bf16.msra.mxu0 0
        %486 = vmatprep.subr.bf16.mxu0 0
        %487 = vmatpush1.bf16.msra.mxu0 0
        %488 = vmatprep.subr.bf16.mxu0 0
        %489 = vmatpush1.bf16.msra.mxu0 0
        %490 = vmatprep.subr.bf16.mxu0 0
        %491 = vmatpush1.bf16.msra.mxu0 0
        %492 = vmatprep.subr.bf16.mxu0 0
        %493 = vmatpush1.bf16.msra.mxu0 0
        %494 = vmatprep.subr.bf16.mxu0 0
        %495 = vmatpush1.bf16.msra.mxu0 0
        %496 = vmatprep.subr.bf16.mxu0 0
        %497 = vmatpush1.bf16.msra.mxu0 0
        %498 = vmatprep.mubr.bf16.mxu0 0
        %499 = vmatmul.mubr.bf16.gmra.mrb[0].mxu0 %v461
        %v500 = vpop.f32.mrb[0].mxu0
        %v501 = vadd.f32 0.0, %v500
        %v502 = vpop.f32.mrb[0].mxu0
        %v503 = vpop.f32.mrb[0].mxu0
        %v504 = vpop.f32.mrb[0].mxu0
        %505 = vdwg.mxu0
        %v506 = vadd.f32 %v441, %v501
        %v507 = vld [vmem:[%s262] sm:$0xe]
        %s508 = sadd.s32 4, %s273
        %s509 = smul.addr %s508, 4
        %s510 = scalar_lea.vmem %s1, %s509
        %v511 = vld [vmem:[%s510] sm:$0xf]
        %v513 = vunpack.c.l.b16 %v507
        %v514 = vpack.c.b16 %v386, %v513
        %v515 = vrot.slane %v514, 1
        %v517 = vsel %vm283, %v515, 0
        %v520 = vsel %vm287, %v511, 0
        %522 = vmatprep.subr.bf16.mxu0 0
        %523 = vmatpush1.bf16.msra.mxu0 %v520
        %524 = vmatprep.subr.bf16.mxu0 0
        %525 = vmatpush1.bf16.msra.mxu0 0
        %526 = vmatprep.subr.bf16.mxu0 0
        %527 = vmatpush1.bf16.msra.mxu0 0
        %528 = vmatprep.subr.bf16.mxu0 0
        %529 = vmatpush1.bf16.msra.mxu0 0
        %530 = vmatprep.subr.bf16.mxu0 0
        %531 = vmatpush1.bf16.msra.mxu0 0
        %532 = vmatprep.subr.bf16.mxu0 0
        %533 = vmatpush1.bf16.msra.mxu0 0
        %534 = vmatprep.subr.bf16.mxu0 0
        %535 = vmatpush1.bf16.msra.mxu0 0
        %536 = vmatprep.subr.bf16.mxu0 0
        %537 = vmatpush1.bf16.msra.mxu0 0
        %538 = vmatprep.subr.bf16.mxu0 0
        %539 = vmatpush1.bf16.msra.mxu0 0
        %540 = vmatprep.subr.bf16.mxu0 0
        %541 = vmatpush1.bf16.msra.mxu0 0
        %542 = vmatprep.subr.bf16.mxu0 0
        %543 = vmatpush1.bf16.msra.mxu0 0
        %544 = vmatprep.subr.bf16.mxu0 0
        %545 = vmatpush1.bf16.msra.mxu0 0
        %546 = vmatprep.subr.bf16.mxu0 0
        %547 = vmatpush1.bf16.msra.mxu0 0
        %548 = vmatprep.subr.bf16.mxu0 0
        %549 = vmatpush1.bf16.msra.mxu0 0
        %550 = vmatprep.subr.bf16.mxu0 0
        %551 = vmatpush1.bf16.msra.mxu0 0
        %552 = vmatprep.subr.bf16.mxu0 0
        %553 = vmatpush1.bf16.msra.mxu0 0
        %554 = vmatprep.mubr.bf16.mxu0 0
        %555 = vmatmul.mubr.bf16.gmra.mrb[0].mxu0 %v517
        %v556 = vpop.f32.mrb[0].mxu0
        %v557 = vadd.f32 0.0, %v556
        %v558 = vpop.f32.mrb[0].mxu0
        %v559 = vpop.f32.mrb[0].mxu0
        %v560 = vpop.f32.mrb[0].mxu0
        %561 = vdwg.mxu0
        %v562 = vadd.f32 %v506, %v557
        %v563 = vld [vmem:[%s277] sm:$0xe]
        %s564 = sadd.s32 5, %s273
        %s565 = smul.addr %s564, 4
        %s566 = scalar_lea.vmem %s1, %s565
        %v567 = vld [vmem:[%s566] sm:$0xf]
        %v569 = vunpack.c.l.b16 %v563
        %v570 = vpack.c.b16 %v451, %v569
        %v571 = vrot.slane %v570, 1
        %v573 = vsel %vm283, %v571, 0
        %v576 = vsel %vm287, %v567, 0
        %578 = vmatprep.subr.bf16.mxu0 0
        %579 = vmatpush1.bf16.msra.mxu0 %v576
        %580 = vmatprep.subr.bf16.mxu0 0
        %581 = vmatpush1.bf16.msra.mxu0 0
        %582 = vmatprep.subr.bf16.mxu0 0
        %583 = vmatpush1.bf16.msra.mxu0 0
        %584 = vmatprep.subr.bf16.mxu0 0
        %585 = vmatpush1.bf16.msra.mxu0 0
        %586 = vmatprep.subr.bf16.mxu0 0
        %587 = vmatpush1.bf16.msra.mxu0 0
        %588 = vmatprep.subr.bf16.mxu0 0
        %589 = vmatpush1.bf16.msra.mxu0 0
        %590 = vmatprep.subr.bf16.mxu0 0
        %591 = vmatpush1.bf16.msra.mxu0 0
        %592 = vmatprep.subr.bf16.mxu0 0
        %593 = vmatpush1.bf16.msra.mxu0 0
        %594 = vmatprep.subr.bf16.mxu0 0
        %595 = vmatpush1.bf16.msra.mxu0 0
        %596 = vmatprep.subr.bf16.mxu0 0
        %597 = vmatpush1.bf16.msra.mxu0 0
        %598 = vmatprep.subr.bf16.mxu0 0
        %599 = vmatpush1.bf16.msra.mxu0 0
        %600 = vmatprep.subr.bf16.mxu0 0
        %601 = vmatpush1.bf16.msra.mxu0 0
        %602 = vmatprep.subr.bf16.mxu0 0
        %603 = vmatpush1.bf16.msra.mxu0 0
        %604 = vmatprep.subr.bf16.mxu0 0
        %605 = vmatpush1.bf16.msra.mxu0 0
        %606 = vmatprep.subr.bf16.mxu0 0
        %607 = vmatpush1.bf16.msra.mxu0 0
        %608 = vmatprep.subr.bf16.mxu0 0
        %609 = vmatpush1.bf16.msra.mxu0 0
        %610 = vmatprep.mubr.bf16.mxu0 0
        %611 = vmatmul.mubr.bf16.gmra.mrb[0].mxu0 %v573
        %v612 = vpop.f32.mrb[0].mxu0
        %v613 = vadd.f32 0.0, %v612
        %v614 = vpop.f32.mrb[0].mxu0
        %v615 = vpop.f32.mrb[0].mxu0
        %v616 = vpop.f32.mrb[0].mxu0
        %617 = vdwg.mxu0
        %v618 = vadd.f32 %v562, %v613
        %v619 = vld [vmem:[%s262 + $0x4] sm:$0x3]
        %s620 = sadd.s32 6, %s273
        %s621 = smul.addr %s620, 4
        %s622 = scalar_lea.vmem %s1, %s621
        %v623 = vld [vmem:[%s622] sm:$0xf]
        %v625 = vunpack.c.l.b16 %v619
        %v626 = vpack.c.b16 %v625, %v513
        %v628 = vshrl.u32 %v626, 16
        %v630 = vrot.slane %v628, 1
        %v631 = vshll.u32 %v626, 16
        %v633 = vrot.slane %v631, 2
        %v634 = vor.u32 %v630, %v633
        %v636 = vsel %vm283, %v634, 0
        %v639 = vsel %vm287, %v623, 0
        %641 = vmatprep.subr.bf16.mxu0 0
        %642 = vmatpush1.bf16.msra.mxu0 %v639
        %643 = vmatprep.subr.bf16.mxu0 0
        %644 = vmatpush1.bf16.msra.mxu0 0
        %645 = vmatprep.subr.bf16.mxu0 0
        %646 = vmatpush1.bf16.msra.mxu0 0
        %647 = vmatprep.subr.bf16.mxu0 0
        %648 = vmatpush1.bf16.msra.mxu0 0
        %649 = vmatprep.subr.bf16.mxu0 0
        %650 = vmatpush1.bf16.msra.mxu0 0
        %651 = vmatprep.subr.bf16.mxu0 0
        %652 = vmatpush1.bf16.msra.mxu0 0
        %653 = vmatprep.subr.bf16.mxu0 0
        %654 = vmatpush1.bf16.msra.mxu0 0
        %655 = vmatprep.subr.bf16.mxu0 0
        %656 = vmatpush1.bf16.msra.mxu0 0
        %657 = vmatprep.subr.bf16.mxu0 0
        %658 = vmatpush1.bf16.msra.mxu0 0
        %659 = vmatprep.subr.bf16.mxu0 0
        %660 = vmatpush1.bf16.msra.mxu0 0
        %661 = vmatprep.subr.bf16.mxu0 0
        %662 = vmatpush1.bf16.msra.mxu0 0
        %663 = vmatprep.subr.bf16.mxu0 0
        %664 = vmatpush1.bf16.msra.mxu0 0
        %665 = vmatprep.subr.bf16.mxu0 0
        %666 = vmatpush1.bf16.msra.mxu0 0
        %667 = vmatprep.subr.bf16.mxu0 0
        %668 = vmatpush1.bf16.msra.mxu0 0
        %669 = vmatprep.subr.bf16.mxu0 0
        %670 = vmatpush1.bf16.msra.mxu0 0
        %671 = vmatprep.subr.bf16.mxu0 0
        %672 = vmatpush1.bf16.msra.mxu0 0
        %673 = vmatprep.mubr.bf16.mxu0 0
        %674 = vmatmul.mubr.bf16.gmra.mrb[0].mxu0 %v636
        %v675 = vpop.f32.mrb[0].mxu0
        %v676 = vadd.f32 0.0, %v675
        %v677 = vpop.f32.mrb[0].mxu0
        %v678 = vpop.f32.mrb[0].mxu0
        %v679 = vpop.f32.mrb[0].mxu0
        %680 = vdwg.mxu0
        %v681 = vadd.f32 %v618, %v676
        %v682 = vld [vmem:[%s239] sm:$0xff]
        %v683 = vadd.f32 %v682, %v681
        %vm684 = vcmask 523264
        %685 = vst.msk [vmem:[%s239] sm:$0xff] %vm684, %v683
        %p686 = scmp.eq.s32.totalorder %s29, 6
        // Predicated region
        $region33: #{tpu_custom_call.1} parent=27 // pred_check
          %p687 = pneg %p686
        $region34: #{tpu_custom_call.1} parent=27 // pred_check_branch
          %689 = sbr.rel (%p687) target = $region36
        $region35: #{tpu_custom_call.1} parent=27 // pred_region
          %v690 = vld [vmem:[%s239] sm:$0xff]
          %v691 = vsel %vm684, %v690, 0.0
          %v692 = vrot.slane %v691, 4
          %v693 = vadd.f32 %v691, %v692
          %v694 = vrot.slane %v693, 2
          %v695 = vadd.f32 %v693, %v694
          %v696 = vrot.slane %v695, 1
          %v697 = vadd.f32 %v695, %v696
          %vm698 = vcmask 516096
          %699 = vst.msk [vmem:[%s245] sm:$0x1] %vm698, %v697
          %v700 = vmul.f32 %v690, %v690
          %v701 = vsel %vm684, %v700, 0.0
          %v702 = vrot.slane %v701, 4
          %v703 = vadd.f32 %v701, %v702
          %v704 = vrot.slane %v703, 2
          %v705 = vadd.f32 %v703, %v704
          %v706 = vrot.slane %v705, 1
          %v707 = vadd.f32 %v705, %v706
          %708 = vst.msk [vmem:[%s251] sm:$0x1] %vm698, %v707
        $region36: #{tpu_custom_call.1} parent=27 // pred_fallthru
          _
        %s709 = sand.u32 %s104, 1
        %s710 = scalar_lea.sflag [#allocation3], %s709
        %s711 = sand.u32 %s104, 1
        %s712 = smul.addr %s711, 8
        %s713 = scalar_lea.vmem [#allocation2], %s712
        %s714 = sand.u32 %s22, 1
        %s715 = scalar_lea.sflag [#allocation5], %s714
        %s716 = sand.u32 %s132, 1
        %s717 = scalar_lea.vmem [#allocation4], %s716
        %s718 = sand.u32 %s22, 1
        %s719 = scalar_lea.sflag [#allocation5], %s718
        %s720 = sand.u32 %s160, 1
        %s721 = scalar_lea.vmem [#allocation6], %s720
        // Predicated region
        $region37: #{tpu_custom_call.1} parent=27 // pred_check
          %p722 = pneg %p114
        $region38: #{tpu_custom_call.1} parent=27 // pred_check_branch
          %724 = sbr.rel (%p722) target = $region40
        $region39: #{tpu_custom_call.1} parent=27 // pred_region
          %s726 = ssub.s32 128, 128
          %727 = vsyncadd %s710, %s726
          %s728 = smul.addr %s27, 8
          %s729 = sadd.s32 %s28, %s728
          %s730 = smul.addr %s729, 128
          %s731 = scalar_lea.hbm %s2, %s730
          %s733 = sshll.u32 %s713, 4
          %s734 = int_to_ptr.vmem [resolvable:$true] %s733
          %736 = dma.vmem_to_hbm [thread:$0]  %s734, 128, %s731, %s710
        $region40: #{tpu_custom_call.1} parent=27 // pred_fallthru
          _
        // Predicated region
        $region41: #{tpu_custom_call.1} parent=27 // pred_check
          %p737 = pneg %p142
        $region42: #{tpu_custom_call.1} parent=27 // pred_check_branch
          %739 = sbr.rel (%p737) target = $region44
        $region43: #{tpu_custom_call.1} parent=27 // pred_region
          %s741 = ssub.s32 16, 16
          %742 = vsyncadd %s715, %s741
          %s743 = smul.addr %s27, 8
          %s744 = sadd.s32 %s28, %s743
          %s745 = smul.addr %s744, 16
          %s746 = scalar_lea.hbm %s3, %s745
          %s748 = sshll.u32 %s717, 4
          %s749 = int_to_ptr.vmem [resolvable:$true] %s748
          %751 = dma.vmem_to_hbm [thread:$0]  %s749, 16, %s746, %s715
        $region44: #{tpu_custom_call.1} parent=27 // pred_fallthru
          _
        // Predicated region
        $region45: #{tpu_custom_call.1} parent=27 // pred_check
          %p752 = pneg %p170
        $region46: #{tpu_custom_call.1} parent=27 // pred_check_branch
          %754 = sbr.rel (%p752) target = $region48
        $region47: #{tpu_custom_call.1} parent=27 // pred_region
          %s756 = ssub.s32 16, 16
          %757 = vsyncadd %s719, %s756
          %s758 = smul.addr %s27, 8
          %s759 = sadd.s32 %s28, %s758
          %s760 = smul.addr %s759, 16
          %s761 = scalar_lea.hbm %s4, %s760
          %s763 = sshll.u32 %s721, 4
          %s764 = int_to_ptr.vmem [resolvable:$true] %s763
          %766 = dma.vmem_to_hbm [thread:$0]  %s764, 16, %s761, %s719
        $region48: #{tpu_custom_call.1} parent=27 // pred_fallthru
          _
      $region28: #{tpu_custom_call.1} parent=5 // pred_fallthru
        _
      %p767 = scmp.le.s32.totalorder 2, %s17
      // Predicated region
      $region49: #{tpu_custom_call.1} parent=5 // pred_check
        %p768 = pneg %p767
      $region50: #{tpu_custom_call.1} parent=5 // pred_check_branch
        %770 = sbr.rel (%p768) target = $region52
      $region51: #{tpu_custom_call.1} parent=5 // pred_region
        %s771 = ssub.s32 %s17, 2
        // Predicated region
        $region53: #{tpu_custom_call.1} parent=51 // pred_check
          %p772 = pneg %p120
        $region54: #{tpu_custom_call.1} parent=51 // pred_check_branch
          %774 = sbr.rel (%p772) target = $region56
        $region55: #{tpu_custom_call.1} parent=51 // pred_region
          %s775 = sand.u32 %s105, 1
          %s776 = scalar_lea.sflag [#allocation3], %s775
          %s777 = sand.u32 %s105, 1
          %s778 = smul.addr %s777, 8
          %s779 = scalar_lea.vmem [#allocation2], %s778
          %780 = dma.done %s776, 128
        $region56: #{tpu_custom_call.1} parent=51 // pred_fallthru
          _
        // Predicated region
        $region57: #{tpu_custom_call.1} parent=51 // pred_check
          %p781 = pneg %p148
        $region58: #{tpu_custom_call.1} parent=51 // pred_check_branch
          %783 = sbr.rel (%p781) target = $region60
        $region59: #{tpu_custom_call.1} parent=51 // pred_region
          %s784 = sand.u32 %s23, 1
          %s785 = scalar_lea.sflag [#allocation5], %s784
          %s786 = sand.u32 %s133, 1
          %s787 = scalar_lea.vmem [#allocation4], %s786
          %788 = dma.done %s785, 16
        $region60: #{tpu_custom_call.1} parent=51 // pred_fallthru
          _
        // Predicated region
        $region61: #{tpu_custom_call.1} parent=51 // pred_check
          %p789 = pneg %p176
        $region62: #{tpu_custom_call.1} parent=51 // pred_check_branch
          %791 = sbr.rel (%p789) target = $region64
        $region63: #{tpu_custom_call.1} parent=51 // pred_region
          %s792 = sand.u32 %s23, 1
          %s793 = scalar_lea.sflag [#allocation5], %s792
          %s794 = sand.u32 %s161, 1
          %s795 = scalar_lea.vmem [#allocation6], %s794
          %796 = dma.done %s793, 16
        $region64: #{tpu_custom_call.1} parent=51 // pred_fallthru
          _
      $region52: #{tpu_custom_call.1} parent=5 // pred_fallthru
        _
    $region6: #{tpu_custom_call.1} parent=1 // loop_footer
      %s21 = sadd.s32 1, %s17
    $region7: #{tpu_custom_call.1} parent=1 // loop_footer_branch
      %16 = sbr.rel target = $region3
    $region8: #{tpu_custom_call.1} parent=1 // loop_exit
      _
    %797 = vsyncpa [#allocation3], 1
    %s798 = scalar_lea.sflag [#allocation3], 1
    %799 = vsyncpa %s798, 1
    %800 = vsyncpa [#allocation5], 1
    %s801 = scalar_lea.sflag [#allocation5], 1
    %802 = vsyncpa %s801, 1

</llo_original>
